<compile_context>
chip_gen: v7x
topology: tpu7x:2x2x1
jax: 0.10.0
libtpu: 0.0.40
codegen_flags: <defaults>
</compile_context>

<pallas_src>
from functools import partial

import jax
import jax.numpy as jnp
from jax.experimental import pallas as pl
from jax.experimental.pallas import tpu as pltpu

# ---------------- problem sizes (small, consistent with the module) ----------
B = 2            # batch
CIN = 3          # input channels of the image
H = W = 7        # spatial dims (AvgPool2d(7,1) on 7x7 == global mean, as in resnet)
C = 32           # in_channels_ of the replaced last layer (feature channels)
NUM_CLASSES = 5  # num_classes
NC_PAD = 128     # lane-dense padded output width


def netadapter_head_kernel(x_ref, p_ref, o_ref):
    """Fused (pre-folded) NetAdapter forward.

    x_ref : (B, CIN, H*W)   VMEM  NCHW buffer viewed with spatial dims flattened
                                  (free reshape; last axis -> lanes)
    p_ref : (CIN+1, NC_PAD) VMEM  rows 0..CIN-1 = folded weight
                                    (conv1x1_w @ fc_w.T) / (H*W), zero-padded
                                  row  CIN      = folded bias
                                    (conv1x1_b @ fc_w.T + fc_b), zero-padded
    o_ref : (B, NC_PAD)     VMEM  lane-dense padded logits
    """
    cin = p_ref.shape[0] - 1

    # Single full-block load of the packed params; slice the *value* below.
    p = p_ref[...]                                                # (CIN+1, NC_PAD)

    # AvgPool2d(7,1) on a 7x7 map == spatial mean; the 1/(H*W) factor is folded
    # into p, so a plain lane-axis sum suffices (one XLU lane-reduce per tile).
    pooled = jnp.sum(x_ref[...], axis=-1)                         # (B, CIN)

    # (B, CIN) @ (CIN, NC_PAD) with CIN == 3: done on the VPU as CIN broadcast
    # multiply-adds instead of an almost-empty MXU matmul (toy-size only; use
    # jnp.dot on the MXU once the contraction dim is realistic).
    out = jnp.broadcast_to(p[cin:cin + 1, :], o_ref.shape)        # bias, (B, NC_PAD)
    for c in range(cin):                                          # static unroll, CIN=3
        out = out + pooled[:, c:c + 1] * p[c:c + 1, :]

    o_ref[...] = out                                              # unmasked lane-dense store


def make_netadapter_params(backbone_w, backbone_b, fc_w, fc_b, h, w):
    """One-time (init-time) weight prep.

    Exact algebraic fold (all stand-in ops are linear):
      out = mean_p(x @ Wb + bb) @ Wfc^T + bfc
          = sum_p(x) @ (Wb @ Wfc^T / HW) + (bb @ Wfc^T + bfc)
    Valid only while the pooling window equals the full spatial extent
    (AvgPool2d(7,1) on a 7x7 map), i.e. the pool is a global mean.
    """
    assert (h, w) == (7, 7), "fold assumes AvgPool2d(7,1) == global mean on 7x7"
    hw = h * w
    cin = backbone_w.shape[0]
    nc = fc_w.shape[0]
    assert nc <= NC_PAD

    w_comb = (backbone_w @ fc_w.T) * (1.0 / hw)                   # (CIN, NC), 1/HW folded
    b_comb = backbone_b @ fc_w.T + fc_b                           # (NC,)

    params = jnp.zeros((cin + 1, NC_PAD), dtype=jnp.float32)      # lane-dense, zero-padded
    params = params.at[:cin, :nc].set(w_comb)
    params = params.at[cin, :nc].set(b_comb)
    return params


@partial(jax.jit, static_argnames=("num_classes",))
def netadapter_forward(x_nchw, params, *, num_classes):
    """Per-call path: free reshape -> one pallas_call -> slice (all one jit)."""
    b, cin, h, w = x_nchw.shape
    # Contiguous NCHW -> (B, CIN, H*W): pure reshape, no transpose, no copy.
    x = x_nchw.reshape(b, cin, h * w)

    out_pad = pl.pallas_call(
        netadapter_head_kernel,
        out_shape=jax.ShapeDtypeStruct((b, params.shape[1]), jnp.float32),
        # Gridless: whole problem (<3 KB) runs in one invocation; whole arrays
        # are placed in VMEM with exactly two input DMAs.
        in_specs=[
            pl.BlockSpec(memory_space=pltpu.MemorySpace.VMEM),
            pl.BlockSpec(memory_space=pltpu.MemorySpace.VMEM),
        ],
        out_specs=pl.BlockSpec(memory_space=pltpu.MemorySpace.VMEM),
    )(x, params)

    return out_pad[:, :num_classes]


def netadapter_reference(x_nchw, backbone_w, backbone_b, fc_w, fc_b):
    """Pure-JAX reference mirroring the PyTorch forward (un-folded)."""
    b, cin, h, w = x_nchw.shape
    x = jnp.transpose(x_nchw, (0, 2, 3, 1)).reshape(b, h * w, cin)
    feat = jnp.einsum("bpc,cd->bpd", x, backbone_w) + backbone_b[None, None, :]
    pooled = feat.mean(axis=1)                      # AvgPool2d(7,1) on 7x7 + flatten
    return pooled @ fc_w.T + fc_b[None, :]          # Linear


if __name__ == "__main__":
    key = jax.random.PRNGKey(0)
    k_x, k_wb, k_bb, k_wfc, k_bfc = jax.random.split(key, 5)

    # deterministic synthetic inputs / parameters
    x = jax.random.normal(k_x, (B, CIN, H, W), dtype=jnp.float32)
    backbone_w = 0.1 * jax.random.normal(k_wb, (CIN, C), dtype=jnp.float32)     # 1x1 conv weight
    backbone_b = 0.1 * jax.random.normal(k_bb, (C,), dtype=jnp.float32)
    fc_w = 0.1 * jax.random.normal(k_wfc, (NUM_CLASSES, C), dtype=jnp.float32)  # PyTorch Linear [out, in]
    fc_b = 0.1 * jax.random.normal(k_bfc, (NUM_CLASSES,), dtype=jnp.float32)

    # Init-time (one-shot) folded params — NOT on the per-call path.
    params = jax.block_until_ready(
        make_netadapter_params(backbone_w, backbone_b, fc_w, fc_b, H, W))

    out = netadapter_forward(x, params, num_classes=NUM_CLASSES)
    out = jax.block_until_ready(out)

    ref = netadapter_reference(x, backbone_w, backbone_b, fc_w, fc_b)
    assert out.shape == (B, NUM_CLASSES)
    # Folding reassociates FP sums -> ~1e-6 level differences; 1e-5 tol passes.
    assert jnp.allclose(out, ref, atol=1e-5, rtol=1e-5), "mismatch vs reference"

    print("KERNEL_OK")
</pallas_src>

<mosaic_0001>
module attributes {stable_mosaic.version = 11 : i64} {
  func.func @netadapter_head_kernel(%arg0: memref<2x3x49xf32, #tpu.memory_space<vmem>>, %arg1: memref<4x128xf32, #tpu.memory_space<vmem>>, %arg2: memref<2x128xf32, #tpu.memory_space<vmem>>) attributes {dimension_semantics = [], scalar_prefetch = 0 : i64, scratch_operands = 0 : i64, tpu.core_type = #tpu.core_type<tc>} {
    %c0 = arith.constant 0 : index
    %c0_0 = arith.constant 0 : index
    %0 = vector.load %arg1[%c0, %c0_0] : memref<4x128xf32, #tpu.memory_space<vmem>>, vector<4x128xf32>
    %c0_1 = arith.constant 0 : index
    %c0_2 = arith.constant 0 : index
    %c0_3 = arith.constant 0 : index
    %1 = vector.load %arg0[%c0_1, %c0_2, %c0_3] : memref<2x3x49xf32, #tpu.memory_space<vmem>>, vector<2x3x49xf32>
    %cst = arith.constant dense<0.000000e+00> : vector<2x3xf32>
    %2 = vector.multi_reduction <add>, %1, %cst [2] : vector<2x3x49xf32> to vector<2x3xf32>
    %3 = vector.extract_strided_slice %0 {offsets = [3, 0], sizes = [1, 128], strides = [1, 1]} : vector<4x128xf32> to vector<1x128xf32>
    %4 = vector.shape_cast %3 : vector<1x128xf32> to vector<1x128xf32>
    %5 = vector.broadcast %4 : vector<1x128xf32> to vector<2x128xf32>
    %6 = vector.extract_strided_slice %2 {offsets = [0, 0], sizes = [2, 1], strides = [1, 1]} : vector<2x3xf32> to vector<2x1xf32>
    %7 = vector.extract_strided_slice %0 {offsets = [0, 0], sizes = [1, 128], strides = [1, 1]} : vector<4x128xf32> to vector<1x128xf32>
    %8 = vector.broadcast %6 : vector<2x1xf32> to vector<2x128xf32>
    %9 = vector.broadcast %7 : vector<1x128xf32> to vector<2x128xf32>
    %10 = arith.mulf %8, %9 : vector<2x128xf32>
    %11 = arith.addf %5, %10 : vector<2x128xf32>
    %12 = vector.extract_strided_slice %2 {offsets = [0, 1], sizes = [2, 1], strides = [1, 1]} : vector<2x3xf32> to vector<2x1xf32>
    %13 = vector.extract_strided_slice %0 {offsets = [1, 0], sizes = [1, 128], strides = [1, 1]} : vector<4x128xf32> to vector<1x128xf32>
    %14 = vector.broadcast %12 : vector<2x1xf32> to vector<2x128xf32>
    %15 = vector.broadcast %13 : vector<1x128xf32> to vector<2x128xf32>
    %16 = arith.mulf %14, %15 : vector<2x128xf32>
    %17 = arith.addf %11, %16 : vector<2x128xf32>
    %18 = vector.extract_strided_slice %2 {offsets = [0, 2], sizes = [2, 1], strides = [1, 1]} : vector<2x3xf32> to vector<2x1xf32>
    %19 = vector.extract_strided_slice %0 {offsets = [2, 0], sizes = [1, 128], strides = [1, 1]} : vector<4x128xf32> to vector<1x128xf32>
    %20 = vector.broadcast %18 : vector<2x1xf32> to vector<2x128xf32>
    %21 = vector.broadcast %19 : vector<1x128xf32> to vector<2x128xf32>
    %22 = arith.mulf %20, %21 : vector<2x128xf32>
    %23 = arith.addf %17, %22 : vector<2x128xf32>
    %c0_4 = arith.constant 0 : index
    %c0_5 = arith.constant 0 : index
    %24 = vector.load %arg2[%c0_4, %c0_5] : memref<2x128xf32, #tpu.memory_space<vmem>>, vector<2x128xf32>
    tpu.vector_store %arg2[%c0_4, %c0_5], %23 {strides = array<i32>} : memref<2x128xf32, #tpu.memory_space<vmem>>, vector<2x128xf32>,
    return
  }
}

</mosaic_0001>

<llo_original>
// kernel: netadapter_forward.1
$region0: #{netadapter_forward.1}
  #allocation0 [shape = 'u32[]', space=smem, size = 0x4, offset = 0x4, fixed_abs, tag = 'smem constant byte address 0x4 - core index']
  #allocation1 [shape = 'u32[144,128]{1,0:T(1,128)}', space=vmem, size = 0x12000, scoped, tag = 'internal scratch']
  %s0 = inlined_call_operand.vmem [shape: f32[2,3,49], index: 0, kind: input, shape index: {}]
  %s1 = inlined_call_operand.vmem [shape: f32[4,128], index: 1, kind: input, shape index: {}]
  %s2 = inlined_call_operand.hbm [shape: f32[2,128], index: 2, kind: output, shape index: {}]
  %s3 = sld [smem:[#allocation0]]
  $region18: #{netadapter_forward.1} parent=0
    _
  %s5 = ssub.s32 1, %s3
  %s6 = scalar_select 0, %s5, %s3
  $region1: #{netadapter_forward.1} parent=0
    #allocation2 [shape = 'u8[1024]{0}', space=vmem, size = 0x400, scoped, tag = 'output window, operand 0, single buffered']
    #allocation3 [shape = 's32[1]{0}', space=sflag, size = 0x4, scoped, tag = 'scoped memory for netadapter_forward.1']
    %7 = vsyncpa [#allocation3], 0
    // Predicated region
    $region2: #{netadapter_forward.1} parent=1 // pred_check
      _
    $region3: #{netadapter_forward.1} parent=1 // pred_check_branch
      %9 = sbr.rel (0) target = $region5
    $region4: #{netadapter_forward.1} parent=1 // pred_region
      _
    $region5: #{netadapter_forward.1} parent=1 // pred_fallthru
      _
    // Predicated region
    $region6: #{netadapter_forward.1} parent=1 // pred_check
      _
    $region7: #{netadapter_forward.1} parent=1 // pred_check_branch
      %11 = sbr.rel (0) target = $region9
    $region8: #{netadapter_forward.1} parent=1 // pred_region
      _
    $region9: #{netadapter_forward.1} parent=1 // pred_fallthru
      _
    %v12 = vld [vmem:[%s1] sm:$0xf]
    %v13 = vld [vmem:[%s0] sm:$0x7]
    %v14 = vld [vmem:[%s0 + $0x4] sm:$0x7]
    %vm15 = vcmask 395264
    %v16 = vsel %vm15, %v13, 0.0
    %17 = vadd.xlane.f32.xlu0 %v16
    %v18 = vpop.xlane.xlu0 %17
    %v19 = vsel %vm15, %v14, 0.0
    %20 = vadd.xlane.f32.xlu0 %v19
    %v21 = vpop.xlane.xlu0 %20
    %v22 = vlaneseq
    %v23 = vshrl.u32 %v22, 7
    %v24 = vsub.s32 3, %v23
    %v25 = vrot.slane %v12, %v24
    %v26 = vlaneseq
    %v27 = vshrl.u32 %v26, 7
    %v28 = vsub.s32 0, %v27
    %v29 = vrot.slane %v18, %v28
    %v30 = vlaneseq
    %v31 = vshrl.u32 %v30, 7
    %v32 = vsub.s32 0, %v31
    %v33 = vrot.slane %v21, %v32
    %v34 = vlaneseq
    %v35 = vshrl.u32 %v34, 7
    %v36 = vsub.s32 0, %v35
    %v37 = vrot.slane %v12, %v36
    %40 = vbcast.lane.b32.xlu0 %v37, 256
    %v41 = vpop.permute.xlu0 %40
    %s43 = sor.u32 256, 8
    %44 = vbcast.lane.b32.xlu0 %v37, %s43
    %v45 = vpop.permute.xlu0 %44
    %s47 = sor.u32 256, 16
    %48 = vbcast.lane.b32.xlu0 %v37, %s47
    %v49 = vpop.permute.xlu0 %48
    %s51 = sor.u32 256, 24
    %52 = vbcast.lane.b32.xlu0 %v37, %s51
    %v53 = vpop.permute.xlu0 %52
    %s55 = sor.u32 256, 32
    %56 = vbcast.lane.b32.xlu0 %v37, %s55
    %v57 = vpop.permute.xlu0 %56
    %s59 = sor.u32 256, 40
    %60 = vbcast.lane.b32.xlu0 %v37, %s59
    %v61 = vpop.permute.xlu0 %60
    %s63 = sor.u32 256, 48
    %64 = vbcast.lane.b32.xlu0 %v37, %s63
    %v65 = vpop.permute.xlu0 %64
    %s67 = sor.u32 256, 56
    %68 = vbcast.lane.b32.xlu0 %v37, %s67
    %v69 = vpop.permute.xlu0 %68
    %s71 = sor.u32 256, 64
    %72 = vbcast.lane.b32.xlu0 %v37, %s71
    %v73 = vpop.permute.xlu0 %72
    %s75 = sor.u32 256, 72
    %76 = vbcast.lane.b32.xlu0 %v37, %s75
    %v77 = vpop.permute.xlu0 %76
    %s79 = sor.u32 256, 80
    %80 = vbcast.lane.b32.xlu0 %v37, %s79
    %v81 = vpop.permute.xlu0 %80
    %s83 = sor.u32 256, 88
    %84 = vbcast.lane.b32.xlu0 %v37, %s83
    %v85 = vpop.permute.xlu0 %84
    %s87 = sor.u32 256, 96
    %88 = vbcast.lane.b32.xlu0 %v37, %s87
    %v89 = vpop.permute.xlu0 %88
    %s91 = sor.u32 256, 104
    %92 = vbcast.lane.b32.xlu0 %v37, %s91
    %v93 = vpop.permute.xlu0 %92
    %s95 = sor.u32 256, 112
    %96 = vbcast.lane.b32.xlu0 %v37, %s95
    %v97 = vpop.permute.xlu0 %96
    %s99 = sor.u32 256, 120
    %100 = vbcast.lane.b32.xlu0 %v37, %s99
    %v101 = vpop.permute.xlu0 %100
    %v118 = vmul.f32 %v29, %v41
    %v119 = vmul.f32 %v29, %v45
    %v120 = vmul.f32 %v29, %v49
    %v121 = vmul.f32 %v29, %v53
    %v122 = vmul.f32 %v29, %v57
    %v123 = vmul.f32 %v29, %v61
    %v124 = vmul.f32 %v29, %v65
    %v125 = vmul.f32 %v29, %v69
    %v126 = vmul.f32 %v29, %v73
    %v127 = vmul.f32 %v29, %v77
    %v128 = vmul.f32 %v29, %v81
    %v129 = vmul.f32 %v29, %v85
    %v130 = vmul.f32 %v29, %v89
    %v131 = vmul.f32 %v29, %v93
    %v132 = vmul.f32 %v29, %v97
    %v133 = vmul.f32 %v29, %v101
    %v134 = vmul.f32 %v33, %v41
    %v135 = vmul.f32 %v33, %v45
    %v136 = vmul.f32 %v33, %v49
    %v137 = vmul.f32 %v33, %v53
    %v138 = vmul.f32 %v33, %v57
    %v139 = vmul.f32 %v33, %v61
    %v140 = vmul.f32 %v33, %v65
    %v141 = vmul.f32 %v33, %v69
    %v142 = vmul.f32 %v33, %v73
    %v143 = vmul.f32 %v33, %v77
    %v144 = vmul.f32 %v33, %v81
    %v145 = vmul.f32 %v33, %v85
    %v146 = vmul.f32 %v33, %v89
    %v147 = vmul.f32 %v33, %v93
    %v148 = vmul.f32 %v33, %v97
    %v149 = vmul.f32 %v33, %v101
    %182 = vset.pattern.permute.xlu0 0
    %183 = vperm.xlu0 %182, %v118
    %v184 = vpop.permute.xlu0 %183
    %185 = vset.pattern.permute.xlu0 0
    %186 = vperm.xlu0 %185, %v119
    %v187 = vpop.permute.xlu0 %186
    %188 = vset.pattern.permute.xlu0 0
    %189 = vperm.xlu0 %188, %v120
    %v190 = vpop.permute.xlu0 %189
    %191 = vset.pattern.permute.xlu0 0
    %192 = vperm.xlu0 %191, %v121
    %v193 = vpop.permute.xlu0 %192
    %194 = vset.pattern.permute.xlu0 0
    %195 = vperm.xlu0 %194, %v122
    %v196 = vpop.permute.xlu0 %195
    %197 = vset.pattern.permute.xlu0 0
    %198 = vperm.xlu0 %197, %v123
    %v199 = vpop.permute.xlu0 %198
    %200 = vset.pattern.permute.xlu0 0
    %201 = vperm.xlu0 %200, %v124
    %v202 = vpop.permute.xlu0 %201
    %203 = vset.pattern.permute.xlu0 0
    %204 = vperm.xlu0 %203, %v125
    %v205 = vpop.permute.xlu0 %204
    %206 = vset.pattern.permute.xlu0 0
    %207 = vperm.xlu0 %206, %v126
    %v208 = vpop.permute.xlu0 %207
    %209 = vset.pattern.permute.xlu0 0
    %210 = vperm.xlu0 %209, %v127
    %v211 = vpop.permute.xlu0 %210
    %212 = vset.pattern.permute.xlu0 0
    %213 = vperm.xlu0 %212, %v128
    %v214 = vpop.permute.xlu0 %213
    %215 = vset.pattern.permute.xlu0 0
    %216 = vperm.xlu0 %215, %v129
    %v217 = vpop.permute.xlu0 %216
    %218 = vset.pattern.permute.xlu0 0
    %219 = vperm.xlu0 %218, %v130
    %v220 = vpop.permute.xlu0 %219
    %221 = vset.pattern.permute.xlu0 0
    %222 = vperm.xlu0 %221, %v131
    %v223 = vpop.permute.xlu0 %222
    %224 = vset.pattern.permute.xlu0 0
    %225 = vperm.xlu0 %224, %v132
    %v226 = vpop.permute.xlu0 %225
    %227 = vset.pattern.permute.xlu0 0
    %228 = vperm.xlu0 %227, %v133
    %v229 = vpop.permute.xlu0 %228
    %230 = vset.pattern.permute.xlu0 0
    %231 = vperm.xlu0 %230, %v134
    %v232 = vpop.permute.xlu0 %231
    %233 = vset.pattern.permute.xlu0 0
    %234 = vperm.xlu0 %233, %v135
    %v235 = vpop.permute.xlu0 %234
    %236 = vset.pattern.permute.xlu0 0
    %237 = vperm.xlu0 %236, %v136
    %v238 = vpop.permute.xlu0 %237
    %239 = vset.pattern.permute.xlu0 0
    %240 = vperm.xlu0 %239, %v137
    %v241 = vpop.permute.xlu0 %240
    %242 = vset.pattern.permute.xlu0 0
    %243 = vperm.xlu0 %242, %v138
    %v244 = vpop.permute.xlu0 %243
    %245 = vset.pattern.permute.xlu0 0
    %246 = vperm.xlu0 %245, %v139
    %v247 = vpop.permute.xlu0 %246
    %248 = vset.pattern.permute.xlu0 0
    %249 = vperm.xlu0 %248, %v140
    %v250 = vpop.permute.xlu0 %249
    %251 = vset.pattern.permute.xlu0 0
    %252 = vperm.xlu0 %251, %v141
    %v253 = vpop.permute.xlu0 %252
    %254 = vset.pattern.permute.xlu0 0
    %255 = vperm.xlu0 %254, %v142
    %v256 = vpop.permute.xlu0 %255
    %257 = vset.pattern.permute.xlu0 0
    %258 = vperm.xlu0 %257, %v143
    %v259 = vpop.permute.xlu0 %258
    %260 = vset.pattern.permute.xlu0 0
    %261 = vperm.xlu0 %260, %v144
    %v262 = vpop.permute.xlu0 %261
    %263 = vset.pattern.permute.xlu0 0
    %264 = vperm.xlu0 %263, %v145
    %v265 = vpop.permute.xlu0 %264
    %266 = vset.pattern.permute.xlu0 0
    %267 = vperm.xlu0 %266, %v146
    %v268 = vpop.permute.xlu0 %267
    %269 = vset.pattern.permute.xlu0 0
    %270 = vperm.xlu0 %269, %v147
    %v271 = vpop.permute.xlu0 %270
    %272 = vset.pattern.permute.xlu0 0
    %273 = vperm.xlu0 %272, %v148
    %v274 = vpop.permute.xlu0 %273
    %275 = vset.pattern.permute.xlu0 0
    %276 = vperm.xlu0 %275, %v149
    %v277 = vpop.permute.xlu0 %276
    %v278 = vlaneseq
    %v279 = vand.u32 %v278, 127
    %v280 = vlaneseq
    %v281 = vshrl.u32 %v280, 7
    %v282 = vsub.s32 %v279, %v281
    %v283 = vrot.slane %v184, %v282
    %v284 = vadd.s32 %v279, 4294967288
    %v285 = vlaneseq
    %v286 = vshrl.u32 %v285, 7
    %v287 = vsub.s32 %v284, %v286
    %v288 = vrot.slane %v187, %v287
    %vm289 = vcmask 130112
    %v290 = vsel %vm289, %v288, %v283
    %v291 = vadd.s32 %v279, 4294967280
    %v292 = vlaneseq
    %v293 = vshrl.u32 %v292, 7
    %v294 = vsub.s32 %v291, %v293
    %v295 = vrot.slane %v190, %v294
    %vm296 = vcmask 195712
    %v297 = vsel %vm296, %v295, %v290
    %v298 = vadd.s32 %v279, 4294967272
    %v299 = vlaneseq
    %v300 = vshrl.u32 %v299, 7
    %v301 = vsub.s32 %v298, %v300
    %v302 = vrot.slane %v193, %v301
    %vm303 = vcmask 261312
    %v304 = vsel %vm303, %v302, %v297
    %v305 = vadd.s32 %v279, 4294967264
    %v306 = vlaneseq
    %v307 = vshrl.u32 %v306, 7
    %v308 = vsub.s32 %v305, %v307
    %v309 = vrot.slane %v196, %v308
    %vm310 = vcmask 326912
    %v311 = vsel %vm310, %v309, %v304
    %v312 = vadd.s32 %v279, 4294967256
    %v313 = vlaneseq
    %v314 = vshrl.u32 %v313, 7
    %v315 = vsub.s32 %v312, %v314
    %v316 = vrot.slane %v199, %v315
    %vm317 = vcmask 392512
    %v318 = vsel %vm317, %v316, %v311
    %v319 = vadd.s32 %v279, 4294967248
    %v320 = vlaneseq
    %v321 = vshrl.u32 %v320, 7
    %v322 = vsub.s32 %v319, %v321
    %v323 = vrot.slane %v202, %v322
    %vm324 = vcmask 458112
    %v325 = vsel %vm324, %v323, %v318
    %v326 = vadd.s32 %v279, 4294967240
    %v327 = vlaneseq
    %v328 = vshrl.u32 %v327, 7
    %v329 = vsub.s32 %v326, %v328
    %v330 = vrot.slane %v205, %v329
    %vm331 = vcmask 523712
    %v332 = vsel %vm331, %v330, %v325
    %v333 = vadd.s32 %v279, 4294967232
    %v334 = vlaneseq
    %v335 = vshrl.u32 %v334, 7
    %v336 = vsub.s32 %v333, %v335
    %v337 = vrot.slane %v208, %v336
    %vm338 = vcmask 589312
    %v339 = vsel %vm338, %v337, %v332
    %v340 = vadd.s32 %v279, 4294967224
    %v341 = vlaneseq
    %v342 = vshrl.u32 %v341, 7
    %v343 = vsub.s32 %v340, %v342
    %v344 = vrot.slane %v211, %v343
    %vm345 = vcmask 654912
    %v346 = vsel %vm345, %v344, %v339
    %v347 = vadd.s32 %v279, 4294967216
    %v348 = vlaneseq
    %v349 = vshrl.u32 %v348, 7
    %v350 = vsub.s32 %v347, %v349
    %v351 = vrot.slane %v214, %v350
    %vm352 = vcmask 720512
    %v353 = vsel %vm352, %v351, %v346
    %v354 = vadd.s32 %v279, 4294967208
    %v355 = vlaneseq
    %v356 = vshrl.u32 %v355, 7
    %v357 = vsub.s32 %v354, %v356
    %v358 = vrot.slane %v217, %v357
    %vm359 = vcmask 786112
    %v360 = vsel %vm359, %v358, %v353
    %v361 = vadd.s32 %v279, 4294967200
    %v362 = vlaneseq
    %v363 = vshrl.u32 %v362, 7
    %v364 = vsub.s32 %v361, %v363
    %v365 = vrot.slane %v220, %v364
    %vm366 = vcmask 851712
    %v367 = vsel %vm366, %v365, %v360
    %v368 = vadd.s32 %v279, 4294967192
    %v369 = vlaneseq
    %v370 = vshrl.u32 %v369, 7
    %v371 = vsub.s32 %v368, %v370
    %v372 = vrot.slane %v223, %v371
    %vm373 = vcmask 917312
    %v374 = vsel %vm373, %v372, %v367
    %v375 = vadd.s32 %v279, 4294967184
    %v376 = vlaneseq
    %v377 = vshrl.u32 %v376, 7
    %v378 = vsub.s32 %v375, %v377
    %v379 = vrot.slane %v226, %v378
    %vm380 = vcmask 982912
    %v381 = vsel %vm380, %v379, %v374
    %v382 = vadd.s32 %v279, 4294967176
    %v383 = vlaneseq
    %v384 = vshrl.u32 %v383, 7
    %v385 = vsub.s32 %v382, %v384
    %v386 = vrot.slane %v229, %v385
    %vm387 = vcmask 1048512
    %v388 = vsel %vm387, %v386, %v381
    %v389 = vlaneseq
    %v390 = vshrl.u32 %v389, 7
    %v391 = vsub.s32 %v279, %v390
    %v392 = vrot.slane %v232, %v391
    %v393 = vlaneseq
    %v394 = vshrl.u32 %v393, 7
    %v395 = vsub.s32 %v284, %v394
    %v396 = vrot.slane %v235, %v395
    %v397 = vsel %vm289, %v396, %v392
    %v398 = vlaneseq
    %v399 = vshrl.u32 %v398, 7
    %v400 = vsub.s32 %v291, %v399
    %v401 = vrot.slane %v238, %v400
    %v402 = vsel %vm296, %v401, %v397
    %v403 = vlaneseq
    %v404 = vshrl.u32 %v403, 7
    %v405 = vsub.s32 %v298, %v404
    %v406 = vrot.slane %v241, %v405
    %v407 = vsel %vm303, %v406, %v402
    %v408 = vlaneseq
    %v409 = vshrl.u32 %v408, 7
    %v410 = vsub.s32 %v305, %v409
    %v411 = vrot.slane %v244, %v410
    %v412 = vsel %vm310, %v411, %v407
    %v413 = vlaneseq
    %v414 = vshrl.u32 %v413, 7
    %v415 = vsub.s32 %v312, %v414
    %v416 = vrot.slane %v247, %v415
    %v417 = vsel %vm317, %v416, %v412
    %v418 = vlaneseq
    %v419 = vshrl.u32 %v418, 7
    %v420 = vsub.s32 %v319, %v419
    %v421 = vrot.slane %v250, %v420
    %v422 = vsel %vm324, %v421, %v417
    %v423 = vlaneseq
    %v424 = vshrl.u32 %v423, 7
    %v425 = vsub.s32 %v326, %v424
    %v426 = vrot.slane %v253, %v425
    %v427 = vsel %vm331, %v426, %v422
    %v428 = vlaneseq
    %v429 = vshrl.u32 %v428, 7
    %v430 = vsub.s32 %v333, %v429
    %v431 = vrot.slane %v256, %v430
    %v432 = vsel %vm338, %v431, %v427
    %v433 = vlaneseq
    %v434 = vshrl.u32 %v433, 7
    %v435 = vsub.s32 %v340, %v434
    %v436 = vrot.slane %v259, %v435
    %v437 = vsel %vm345, %v436, %v432
    %v438 = vlaneseq
    %v439 = vshrl.u32 %v438, 7
    %v440 = vsub.s32 %v347, %v439
    %v441 = vrot.slane %v262, %v440
    %v442 = vsel %vm352, %v441, %v437
    %v443 = vlaneseq
    %v444 = vshrl.u32 %v443, 7
    %v445 = vsub.s32 %v354, %v444
    %v446 = vrot.slane %v265, %v445
    %v447 = vsel %vm359, %v446, %v442
    %v448 = vlaneseq
    %v449 = vshrl.u32 %v448, 7
    %v450 = vsub.s32 %v361, %v449
    %v451 = vrot.slane %v268, %v450
    %v452 = vsel %vm366, %v451, %v447
    %v453 = vlaneseq
    %v454 = vshrl.u32 %v453, 7
    %v455 = vsub.s32 %v368, %v454
    %v456 = vrot.slane %v271, %v455
    %v457 = vsel %vm373, %v456, %v452
    %v458 = vlaneseq
    %v459 = vshrl.u32 %v458, 7
    %v460 = vsub.s32 %v375, %v459
    %v461 = vrot.slane %v274, %v460
    %v462 = vsel %vm380, %v461, %v457
    %v463 = vlaneseq
    %v464 = vshrl.u32 %v463, 7
    %v465 = vsub.s32 %v382, %v464
    %v466 = vrot.slane %v277, %v465
    %v467 = vsel %vm387, %v466, %v462
    %vm468 = vcmask 1041409
    %v469 = vsel %vm468, %v467, %v388
    %v471 = vadd.f32 %v25, %v469
    %v472 = vlaneseq
    %v473 = vshrl.u32 %v472, 7
    %v474 = vsub.s32 1, %v473
    %v475 = vrot.slane %v18, %v474
    %v476 = vlaneseq
    %v477 = vshrl.u32 %v476, 7
    %v478 = vsub.s32 1, %v477
    %v479 = vrot.slane %v21, %v478
    %v480 = vlaneseq
    %v481 = vshrl.u32 %v480, 7
    %v482 = vsub.s32 1, %v481
    %v483 = vrot.slane %v12, %v482
    %486 = vbcast.lane.b32.xlu0 %v483, 256
    %v487 = vpop.permute.xlu0 %486
    %s489 = sor.u32 256, 8
    %490 = vbcast.lane.b32.xlu0 %v483, %s489
    %v491 = vpop.permute.xlu0 %490
    %s493 = sor.u32 256, 16
    %494 = vbcast.lane.b32.xlu0 %v483, %s493
    %v495 = vpop.permute.xlu0 %494
    %s497 = sor.u32 256, 24
    %498 = vbcast.lane.b32.xlu0 %v483, %s497
    %v499 = vpop.permute.xlu0 %498
    %s501 = sor.u32 256, 32
    %502 = vbcast.lane.b32.xlu0 %v483, %s501
    %v503 = vpop.permute.xlu0 %502
    %s505 = sor.u32 256, 40
    %506 = vbcast.lane.b32.xlu0 %v483, %s505
    %v507 = vpop.permute.xlu0 %506
    %s509 = sor.u32 256, 48
    %510 = vbcast.lane.b32.xlu0 %v483, %s509
    %v511 = vpop.permute.xlu0 %510
    %s513 = sor.u32 256, 56
    %514 = vbcast.lane.b32.xlu0 %v483, %s513
    %v515 = vpop.permute.xlu0 %514
    %s517 = sor.u32 256, 64
    %518 = vbcast.lane.b32.xlu0 %v483, %s517
    %v519 = vpop.permute.xlu0 %518
    %s521 = sor.u32 256, 72
    %522 = vbcast.lane.b32.xlu0 %v483, %s521
    %v523 = vpop.permute.xlu0 %522
    %s525 = sor.u32 256, 80
    %526 = vbcast.lane.b32.xlu0 %v483, %s525
    %v527 = vpop.permute.xlu0 %526
    %s529 = sor.u32 256, 88
    %530 = vbcast.lane.b32.xlu0 %v483, %s529
    %v531 = vpop.permute.xlu0 %530
    %s533 = sor.u32 256, 96
    %534 = vbcast.lane.b32.xlu0 %v483, %s533
    %v535 = vpop.permute.xlu0 %534
    %s537 = sor.u32 256, 104
    %538 = vbcast.lane.b32.xlu0 %v483, %s537
    %v539 = vpop.permute.xlu0 %538
    %s541 = sor.u32 256, 112
    %542 = vbcast.lane.b32.xlu0 %v483, %s541
    %v543 = vpop.permute.xlu0 %542
    %s545 = sor.u32 256, 120
    %546 = vbcast.lane.b32.xlu0 %v483, %s545
    %v547 = vpop.permute.xlu0 %546
    %v564 = vmul.f32 %v475, %v487
    %v565 = vmul.f32 %v475, %v491
    %v566 = vmul.f32 %v475, %v495
    %v567 = vmul.f32 %v475, %v499
    %v568 = vmul.f32 %v475, %v503
    %v569 = vmul.f32 %v475, %v507
    %v570 = vmul.f32 %v475, %v511
    %v571 = vmul.f32 %v475, %v515
    %v572 = vmul.f32 %v475, %v519
    %v573 = vmul.f32 %v475, %v523
    %v574 = vmul.f32 %v475, %v527
    %v575 = vmul.f32 %v475, %v531
    %v576 = vmul.f32 %v475, %v535
    %v577 = vmul.f32 %v475, %v539
    %v578 = vmul.f32 %v475, %v543
    %v579 = vmul.f32 %v475, %v547
    %v580 = vmul.f32 %v479, %v487
    %v581 = vmul.f32 %v479, %v491
    %v582 = vmul.f32 %v479, %v495
    %v583 = vmul.f32 %v479, %v499
    %v584 = vmul.f32 %v479, %v503
    %v585 = vmul.f32 %v479, %v507
    %v586 = vmul.f32 %v479, %v511
    %v587 = vmul.f32 %v479, %v515
    %v588 = vmul.f32 %v479, %v519
    %v589 = vmul.f32 %v479, %v523
    %v590 = vmul.f32 %v479, %v527
    %v591 = vmul.f32 %v479, %v531
    %v592 = vmul.f32 %v479, %v535
    %v593 = vmul.f32 %v479, %v539
    %v594 = vmul.f32 %v479, %v543
    %v595 = vmul.f32 %v479, %v547
    %628 = vset.pattern.permute.xlu0 0
    %629 = vperm.xlu0 %628, %v564
    %v630 = vpop.permute.xlu0 %629
    %631 = vset.pattern.permute.xlu0 0
    %632 = vperm.xlu0 %631, %v565
    %v633 = vpop.permute.xlu0 %632
    %634 = vset.pattern.permute.xlu0 0
    %635 = vperm.xlu0 %634, %v566
    %v636 = vpop.permute.xlu0 %635
    %637 = vset.pattern.permute.xlu0 0
    %638 = vperm.xlu0 %637, %v567
    %v639 = vpop.permute.xlu0 %638
    %640 = vset.pattern.permute.xlu0 0
    %641 = vperm.xlu0 %640, %v568
    %v642 = vpop.permute.xlu0 %641
    %643 = vset.pattern.permute.xlu0 0
    %644 = vperm.xlu0 %643, %v569
    %v645 = vpop.permute.xlu0 %644
    %646 = vset.pattern.permute.xlu0 0
    %647 = vperm.xlu0 %646, %v570
    %v648 = vpop.permute.xlu0 %647
    %649 = vset.pattern.permute.xlu0 0
    %650 = vperm.xlu0 %649, %v571
    %v651 = vpop.permute.xlu0 %650
    %652 = vset.pattern.permute.xlu0 0
    %653 = vperm.xlu0 %652, %v572
    %v654 = vpop.permute.xlu0 %653
    %655 = vset.pattern.permute.xlu0 0
    %656 = vperm.xlu0 %655, %v573
    %v657 = vpop.permute.xlu0 %656
    %658 = vset.pattern.permute.xlu0 0
    %659 = vperm.xlu0 %658, %v574
    %v660 = vpop.permute.xlu0 %659
    %661 = vset.pattern.permute.xlu0 0
    %662 = vperm.xlu0 %661, %v575
    %v663 = vpop.permute.xlu0 %662
    %664 = vset.pattern.permute.xlu0 0
    %665 = vperm.xlu0 %664, %v576
    %v666 = vpop.permute.xlu0 %665
    %667 = vset.pattern.permute.xlu0 0
    %668 = vperm.xlu0 %667, %v577
    %v669 = vpop.permute.xlu0 %668
    %670 = vset.pattern.permute.xlu0 0
    %671 = vperm.xlu0 %670, %v578
    %v672 = vpop.permute.xlu0 %671
    %673 = vset.pattern.permute.xlu0 0
    %674 = vperm.xlu0 %673, %v579
    %v675 = vpop.permute.xlu0 %674
    %676 = vset.pattern.permute.xlu0 0
    %677 = vperm.xlu0 %676, %v580
    %v678 = vpop.permute.xlu0 %677
    %679 = vset.pattern.permute.xlu0 0
    %680 = vperm.xlu0 %679, %v581
    %v681 = vpop.permute.xlu0 %680
    %682 = vset.pattern.permute.xlu0 0
    %683 = vperm.xlu0 %682, %v582
    %v684 = vpop.permute.xlu0 %683
    %685 = vset.pattern.permute.xlu0 0
    %686 = vperm.xlu0 %685, %v583
    %v687 = vpop.permute.xlu0 %686
    %688 = vset.pattern.permute.xlu0 0
    %689 = vperm.xlu0 %688, %v584
    %v690 = vpop.permute.xlu0 %689
    %691 = vset.pattern.permute.xlu0 0
    %692 = vperm.xlu0 %691, %v585
    %v693 = vpop.permute.xlu0 %692
    %694 = vset.pattern.permute.xlu0 0
    %695 = vperm.xlu0 %694, %v586
    %v696 = vpop.permute.xlu0 %695
    %697 = vset.pattern.permute.xlu0 0
    %698 = vperm.xlu0 %697, %v587
    %v699 = vpop.permute.xlu0 %698
    %700 = vset.pattern.permute.xlu0 0
    %701 = vperm.xlu0 %700, %v588
    %v702 = vpop.permute.xlu0 %701
    %703 = vset.pattern.permute.xlu0 0
    %704 = vperm.xlu0 %703, %v589
    %v705 = vpop.permute.xlu0 %704
    %706 = vset.pattern.permute.xlu0 0
    %707 = vperm.xlu0 %706, %v590
    %v708 = vpop.permute.xlu0 %707
    %709 = vset.pattern.permute.xlu0 0
    %710 = vperm.xlu0 %709, %v591
    %v711 = vpop.permute.xlu0 %710
    %712 = vset.pattern.permute.xlu0 0
    %713 = vperm.xlu0 %712, %v592
    %v714 = vpop.permute.xlu0 %713
    %715 = vset.pattern.permute.xlu0 0
    %716 = vperm.xlu0 %715, %v593
    %v717 = vpop.permute.xlu0 %716
    %718 = vset.pattern.permute.xlu0 0
    %719 = vperm.xlu0 %718, %v594
    %v720 = vpop.permute.xlu0 %719
    %721 = vset.pattern.permute.xlu0 0
    %722 = vperm.xlu0 %721, %v595
    %v723 = vpop.permute.xlu0 %722
    %v724 = vlaneseq
    %v725 = vshrl.u32 %v724, 7
    %v726 = vsub.s32 %v279, %v725
    %v727 = vrot.slane %v630, %v726
    %v728 = vlaneseq
    %v729 = vshrl.u32 %v728, 7
    %v730 = vsub.s32 %v284, %v729
    %v731 = vrot.slane %v633, %v730
    %v732 = vsel %vm289, %v731, %v727
    %v733 = vlaneseq
    %v734 = vshrl.u32 %v733, 7
    %v735 = vsub.s32 %v291, %v734
    %v736 = vrot.slane %v636, %v735
    %v737 = vsel %vm296, %v736, %v732
    %v738 = vlaneseq
    %v739 = vshrl.u32 %v738, 7
    %v740 = vsub.s32 %v298, %v739
    %v741 = vrot.slane %v639, %v740
    %v742 = vsel %vm303, %v741, %v737
    %v743 = vlaneseq
    %v744 = vshrl.u32 %v743, 7
    %v745 = vsub.s32 %v305, %v744
    %v746 = vrot.slane %v642, %v745
    %v747 = vsel %vm310, %v746, %v742
    %v748 = vlaneseq
    %v749 = vshrl.u32 %v748, 7
    %v750 = vsub.s32 %v312, %v749
    %v751 = vrot.slane %v645, %v750
    %v752 = vsel %vm317, %v751, %v747
    %v753 = vlaneseq
    %v754 = vshrl.u32 %v753, 7
    %v755 = vsub.s32 %v319, %v754
    %v756 = vrot.slane %v648, %v755
    %v757 = vsel %vm324, %v756, %v752
    %v758 = vlaneseq
    %v759 = vshrl.u32 %v758, 7
    %v760 = vsub.s32 %v326, %v759
    %v761 = vrot.slane %v651, %v760
    %v762 = vsel %vm331, %v761, %v757
    %v763 = vlaneseq
    %v764 = vshrl.u32 %v763, 7
    %v765 = vsub.s32 %v333, %v764
    %v766 = vrot.slane %v654, %v765
    %v767 = vsel %vm338, %v766, %v762
    %v768 = vlaneseq
    %v769 = vshrl.u32 %v768, 7
    %v770 = vsub.s32 %v340, %v769
    %v771 = vrot.slane %v657, %v770
    %v772 = vsel %vm345, %v771, %v767
    %v773 = vlaneseq
    %v774 = vshrl.u32 %v773, 7
    %v775 = vsub.s32 %v347, %v774
    %v776 = vrot.slane %v660, %v775
    %v777 = vsel %vm352, %v776, %v772
    %v778 = vlaneseq
    %v779 = vshrl.u32 %v778, 7
    %v780 = vsub.s32 %v354, %v779
    %v781 = vrot.slane %v663, %v780
    %v782 = vsel %vm359, %v781, %v777
    %v783 = vlaneseq
    %v784 = vshrl.u32 %v783, 7
    %v785 = vsub.s32 %v361, %v784
    %v786 = vrot.slane %v666, %v785
    %v787 = vsel %vm366, %v786, %v782
    %v788 = vlaneseq
    %v789 = vshrl.u32 %v788, 7
    %v790 = vsub.s32 %v368, %v789
    %v791 = vrot.slane %v669, %v790
    %v792 = vsel %vm373, %v791, %v787
    %v793 = vlaneseq
    %v794 = vshrl.u32 %v793, 7
    %v795 = vsub.s32 %v375, %v794
    %v796 = vrot.slane %v672, %v795
    %v797 = vsel %vm380, %v796, %v792
    %v798 = vlaneseq
    %v799 = vshrl.u32 %v798, 7
    %v800 = vsub.s32 %v382, %v799
    %v801 = vrot.slane %v675, %v800
    %v802 = vsel %vm387, %v801, %v797
    %v803 = vlaneseq
    %v804 = vshrl.u32 %v803, 7
    %v805 = vsub.s32 %v279, %v804
    %v806 = vrot.slane %v678, %v805
    %v807 = vlaneseq
    %v808 = vshrl.u32 %v807, 7
    %v809 = vsub.s32 %v284, %v808
    %v810 = vrot.slane %v681, %v809
    %v811 = vsel %vm289, %v810, %v806
    %v812 = vlaneseq
    %v813 = vshrl.u32 %v812, 7
    %v814 = vsub.s32 %v291, %v813
    %v815 = vrot.slane %v684, %v814
    %v816 = vsel %vm296, %v815, %v811
    %v817 = vlaneseq
    %v818 = vshrl.u32 %v817, 7
    %v819 = vsub.s32 %v298, %v818
    %v820 = vrot.slane %v687, %v819
    %v821 = vsel %vm303, %v820, %v816
    %v822 = vlaneseq
    %v823 = vshrl.u32 %v822, 7
    %v824 = vsub.s32 %v305, %v823
    %v825 = vrot.slane %v690, %v824
    %v826 = vsel %vm310, %v825, %v821
    %v827 = vlaneseq
    %v828 = vshrl.u32 %v827, 7
    %v829 = vsub.s32 %v312, %v828
    %v830 = vrot.slane %v693, %v829
    %v831 = vsel %vm317, %v830, %v826
    %v832 = vlaneseq
    %v833 = vshrl.u32 %v832, 7
    %v834 = vsub.s32 %v319, %v833
    %v835 = vrot.slane %v696, %v834
    %v836 = vsel %vm324, %v835, %v831
    %v837 = vlaneseq
    %v838 = vshrl.u32 %v837, 7
    %v839 = vsub.s32 %v326, %v838
    %v840 = vrot.slane %v699, %v839
    %v841 = vsel %vm331, %v840, %v836
    %v842 = vlaneseq
    %v843 = vshrl.u32 %v842, 7
    %v844 = vsub.s32 %v333, %v843
    %v845 = vrot.slane %v702, %v844
    %v846 = vsel %vm338, %v845, %v841
    %v847 = vlaneseq
    %v848 = vshrl.u32 %v847, 7
    %v849 = vsub.s32 %v340, %v848
    %v850 = vrot.slane %v705, %v849
    %v851 = vsel %vm345, %v850, %v846
    %v852 = vlaneseq
    %v853 = vshrl.u32 %v852, 7
    %v854 = vsub.s32 %v347, %v853
    %v855 = vrot.slane %v708, %v854
    %v856 = vsel %vm352, %v855, %v851
    %v857 = vlaneseq
    %v858 = vshrl.u32 %v857, 7
    %v859 = vsub.s32 %v354, %v858
    %v860 = vrot.slane %v711, %v859
    %v861 = vsel %vm359, %v860, %v856
    %v862 = vlaneseq
    %v863 = vshrl.u32 %v862, 7
    %v864 = vsub.s32 %v361, %v863
    %v865 = vrot.slane %v714, %v864
    %v866 = vsel %vm366, %v865, %v861
    %v867 = vlaneseq
    %v868 = vshrl.u32 %v867, 7
    %v869 = vsub.s32 %v368, %v868
    %v870 = vrot.slane %v717, %v869
    %v871 = vsel %vm373, %v870, %v866
    %v872 = vlaneseq
    %v873 = vshrl.u32 %v872, 7
    %v874 = vsub.s32 %v375, %v873
    %v875 = vrot.slane %v720, %v874
    %v876 = vsel %vm380, %v875, %v871
    %v877 = vlaneseq
    %v878 = vshrl.u32 %v877, 7
    %v879 = vsub.s32 %v382, %v878
    %v880 = vrot.slane %v723, %v879
    %v881 = vsel %vm387, %v880, %v876
    %v882 = vsel %vm468, %v881, %v802
    %v884 = vadd.f32 %v471, %v882
    %v885 = vlaneseq
    %v886 = vshrl.u32 %v885, 7
    %v887 = vsub.s32 2, %v886
    %v888 = vrot.slane %v18, %v887
    %v889 = vlaneseq
    %v890 = vshrl.u32 %v889, 7
    %v891 = vsub.s32 2, %v890
    %v892 = vrot.slane %v21, %v891
    %v893 = vlaneseq
    %v894 = vshrl.u32 %v893, 7
    %v895 = vsub.s32 2, %v894
    %v896 = vrot.slane %v12, %v895
    %899 = vbcast.lane.b32.xlu0 %v896, 256
    %v900 = vpop.permute.xlu0 %899
    %s902 = sor.u32 256, 8
    %903 = vbcast.lane.b32.xlu0 %v896, %s902
    %v904 = vpop.permute.xlu0 %903
    %s906 = sor.u32 256, 16
    %907 = vbcast.lane.b32.xlu0 %v896, %s906
    %v908 = vpop.permute.xlu0 %907
    %s910 = sor.u32 256, 24
    %911 = vbcast.lane.b32.xlu0 %v896, %s910
    %v912 = vpop.permute.xlu0 %911
    %s914 = sor.u32 256, 32
    %915 = vbcast.lane.b32.xlu0 %v896, %s914
    %v916 = vpop.permute.xlu0 %915
    %s918 = sor.u32 256, 40
    %919 = vbcast.lane.b32.xlu0 %v896, %s918
    %v920 = vpop.permute.xlu0 %919
    %s922 = sor.u32 256, 48
    %923 = vbcast.lane.b32.xlu0 %v896, %s922
    %v924 = vpop.permute.xlu0 %923
    %s926 = sor.u32 256, 56
    %927 = vbcast.lane.b32.xlu0 %v896, %s926
    %v928 = vpop.permute.xlu0 %927
    %s930 = sor.u32 256, 64
    %931 = vbcast.lane.b32.xlu0 %v896, %s930
    %v932 = vpop.permute.xlu0 %931
    %s934 = sor.u32 256, 72
    %935 = vbcast.lane.b32.xlu0 %v896, %s934
    %v936 = vpop.permute.xlu0 %935
    %s938 = sor.u32 256, 80
    %939 = vbcast.lane.b32.xlu0 %v896, %s938
    %v940 = vpop.permute.xlu0 %939
    %s942 = sor.u32 256, 88
    %943 = vbcast.lane.b32.xlu0 %v896, %s942
    %v944 = vpop.permute.xlu0 %943
    %s946 = sor.u32 256, 96
    %947 = vbcast.lane.b32.xlu0 %v896, %s946
    %v948 = vpop.permute.xlu0 %947
    %s950 = sor.u32 256, 104
    %951 = vbcast.lane.b32.xlu0 %v896, %s950
    %v952 = vpop.permute.xlu0 %951
    %s954 = sor.u32 256, 112
    %955 = vbcast.lane.b32.xlu0 %v896, %s954
    %v956 = vpop.permute.xlu0 %955
    %s958 = sor.u32 256, 120
    %959 = vbcast.lane.b32.xlu0 %v896, %s958
    %v960 = vpop.permute.xlu0 %959
    %v977 = vmul.f32 %v888, %v900
    %v978 = vmul.f32 %v888, %v904
    %v979 = vmul.f32 %v888, %v908
    %v980 = vmul.f32 %v888, %v912
    %v981 = vmul.f32 %v888, %v916
    %v982 = vmul.f32 %v888, %v920
    %v983 = vmul.f32 %v888, %v924
    %v984 = vmul.f32 %v888, %v928
    %v985 = vmul.f32 %v888, %v932
    %v986 = vmul.f32 %v888, %v936
    %v987 = vmul.f32 %v888, %v940
    %v988 = vmul.f32 %v888, %v944
    %v989 = vmul.f32 %v888, %v948
    %v990 = vmul.f32 %v888, %v952
    %v991 = vmul.f32 %v888, %v956
    %v992 = vmul.f32 %v888, %v960
    %v993 = vmul.f32 %v892, %v900
    %v994 = vmul.f32 %v892, %v904
    %v995 = vmul.f32 %v892, %v908
    %v996 = vmul.f32 %v892, %v912
    %v997 = vmul.f32 %v892, %v916
    %v998 = vmul.f32 %v892, %v920
    %v999 = vmul.f32 %v892, %v924
    %v1000 = vmul.f32 %v892, %v928
    %v1001 = vmul.f32 %v892, %v932
    %v1002 = vmul.f32 %v892, %v936
    %v1003 = vmul.f32 %v892, %v940
    %v1004 = vmul.f32 %v892, %v944
    %v1005 = vmul.f32 %v892, %v948
    %v1006 = vmul.f32 %v892, %v952
    %v1007 = vmul.f32 %v892, %v956
    %v1008 = vmul.f32 %v892, %v960
    %1041 = vset.pattern.permute.xlu0 0
    %1042 = vperm.xlu0 %1041, %v977
    %v1043 = vpop.permute.xlu0 %1042
    %1044 = vset.pattern.permute.xlu0 0
    %1045 = vperm.xlu0 %1044, %v978
    %v1046 = vpop.permute.xlu0 %1045
    %1047 = vset.pattern.permute.xlu0 0
    %1048 = vperm.xlu0 %1047, %v979
    %v1049 = vpop.permute.xlu0 %1048
    %1050 = vset.pattern.permute.xlu0 0
    %1051 = vperm.xlu0 %1050, %v980
    %v1052 = vpop.permute.xlu0 %1051
    %1053 = vset.pattern.permute.xlu0 0
    %1054 = vperm.xlu0 %1053, %v981
    %v1055 = vpop.permute.xlu0 %1054
    %1056 = vset.pattern.permute.xlu0 0
    %1057 = vperm.xlu0 %1056, %v982
    %v1058 = vpop.permute.xlu0 %1057
    %1059 = vset.pattern.permute.xlu0 0
    %1060 = vperm.xlu0 %1059, %v983
    %v1061 = vpop.permute.xlu0 %1060
    %1062 = vset.pattern.permute.xlu0 0
    %1063 = vperm.xlu0 %1062, %v984
    %v1064 = vpop.permute.xlu0 %1063
    %1065 = vset.pattern.permute.xlu0 0
    %1066 = vperm.xlu0 %1065, %v985
    %v1067 = vpop.permute.xlu0 %1066
    %1068 = vset.pattern.permute.xlu0 0
    %1069 = vperm.xlu0 %1068, %v986
    %v1070 = vpop.permute.xlu0 %1069
    %1071 = vset.pattern.permute.xlu0 0
    %1072 = vperm.xlu0 %1071, %v987
    %v1073 = vpop.permute.xlu0 %1072
    %1074 = vset.pattern.permute.xlu0 0
    %1075 = vperm.xlu0 %1074, %v988
    %v1076 = vpop.permute.xlu0 %1075
    %1077 = vset.pattern.permute.xlu0 0
    %1078 = vperm.xlu0 %1077, %v989
    %v1079 = vpop.permute.xlu0 %1078
    %1080 = vset.pattern.permute.xlu0 0
    %1081 = vperm.xlu0 %1080, %v990
    %v1082 = vpop.permute.xlu0 %1081
    %1083 = vset.pattern.permute.xlu0 0
    %1084 = vperm.xlu0 %1083, %v991
    %v1085 = vpop.permute.xlu0 %1084
    %1086 = vset.pattern.permute.xlu0 0
    %1087 = vperm.xlu0 %1086, %v992
    %v1088 = vpop.permute.xlu0 %1087
    %1089 = vset.pattern.permute.xlu0 0
    %1090 = vperm.xlu0 %1089, %v993
    %v1091 = vpop.permute.xlu0 %1090
    %1092 = vset.pattern.permute.xlu0 0
    %1093 = vperm.xlu0 %1092, %v994
    %v1094 = vpop.permute.xlu0 %1093
    %1095 = vset.pattern.permute.xlu0 0
    %1096 = vperm.xlu0 %1095, %v995
    %v1097 = vpop.permute.xlu0 %1096
    %1098 = vset.pattern.permute.xlu0 0
    %1099 = vperm.xlu0 %1098, %v996
    %v1100 = vpop.permute.xlu0 %1099
    %1101 = vset.pattern.permute.xlu0 0
    %1102 = vperm.xlu0 %1101, %v997
    %v1103 = vpop.permute.xlu0 %1102
    %1104 = vset.pattern.permute.xlu0 0
    %1105 = vperm.xlu0 %1104, %v998
    %v1106 = vpop.permute.xlu0 %1105
    %1107 = vset.pattern.permute.xlu0 0
    %1108 = vperm.xlu0 %1107, %v999
    %v1109 = vpop.permute.xlu0 %1108
    %1110 = vset.pattern.permute.xlu0 0
    %1111 = vperm.xlu0 %1110, %v1000
    %v1112 = vpop.permute.xlu0 %1111
    %1113 = vset.pattern.permute.xlu0 0
    %1114 = vperm.xlu0 %1113, %v1001
    %v1115 = vpop.permute.xlu0 %1114
    %1116 = vset.pattern.permute.xlu0 0
    %1117 = vperm.xlu0 %1116, %v1002
    %v1118 = vpop.permute.xlu0 %1117
    %1119 = vset.pattern.permute.xlu0 0
    %1120 = vperm.xlu0 %1119, %v1003
    %v1121 = vpop.permute.xlu0 %1120
    %1122 = vset.pattern.permute.xlu0 0
    %1123 = vperm.xlu0 %1122, %v1004
    %v1124 = vpop.permute.xlu0 %1123
    %1125 = vset.pattern.permute.xlu0 0
    %1126 = vperm.xlu0 %1125, %v1005
    %v1127 = vpop.permute.xlu0 %1126
    %1128 = vset.pattern.permute.xlu0 0
    %1129 = vperm.xlu0 %1128, %v1006
    %v1130 = vpop.permute.xlu0 %1129
    %1131 = vset.pattern.permute.xlu0 0
    %1132 = vperm.xlu0 %1131, %v1007
    %v1133 = vpop.permute.xlu0 %1132
    %1134 = vset.pattern.permute.xlu0 0
    %1135 = vperm.xlu0 %1134, %v1008
    %v1136 = vpop.permute.xlu0 %1135
    %v1137 = vlaneseq
    %v1138 = vshrl.u32 %v1137, 7
    %v1139 = vsub.s32 %v279, %v1138
    %v1140 = vrot.slane %v1043, %v1139
    %v1141 = vlaneseq
    %v1142 = vshrl.u32 %v1141, 7
    %v1143 = vsub.s32 %v284, %v1142
    %v1144 = vrot.slane %v1046, %v1143
    %v1145 = vsel %vm289, %v1144, %v1140
    %v1146 = vlaneseq
    %v1147 = vshrl.u32 %v1146, 7
    %v1148 = vsub.s32 %v291, %v1147
    %v1149 = vrot.slane %v1049, %v1148
    %v1150 = vsel %vm296, %v1149, %v1145
    %v1151 = vlaneseq
    %v1152 = vshrl.u32 %v1151, 7
    %v1153 = vsub.s32 %v298, %v1152
    %v1154 = vrot.slane %v1052, %v1153
    %v1155 = vsel %vm303, %v1154, %v1150
    %v1156 = vlaneseq
    %v1157 = vshrl.u32 %v1156, 7
    %v1158 = vsub.s32 %v305, %v1157
    %v1159 = vrot.slane %v1055, %v1158
    %v1160 = vsel %vm310, %v1159, %v1155
    %v1161 = vlaneseq
    %v1162 = vshrl.u32 %v1161, 7
    %v1163 = vsub.s32 %v312, %v1162
    %v1164 = vrot.slane %v1058, %v1163
    %v1165 = vsel %vm317, %v1164, %v1160
    %v1166 = vlaneseq
    %v1167 = vshrl.u32 %v1166, 7
    %v1168 = vsub.s32 %v319, %v1167
    %v1169 = vrot.slane %v1061, %v1168
    %v1170 = vsel %vm324, %v1169, %v1165
    %v1171 = vlaneseq
    %v1172 = vshrl.u32 %v1171, 7
    %v1173 = vsub.s32 %v326, %v1172
    %v1174 = vrot.slane %v1064, %v1173
    %v1175 = vsel %vm331, %v1174, %v1170
    %v1176 = vlaneseq
    %v1177 = vshrl.u32 %v1176, 7
    %v1178 = vsub.s32 %v333, %v1177
    %v1179 = vrot.slane %v1067, %v1178
    %v1180 = vsel %vm338, %v1179, %v1175
    %v1181 = vlaneseq
    %v1182 = vshrl.u32 %v1181, 7
    %v1183 = vsub.s32 %v340, %v1182
    %v1184 = vrot.slane %v1070, %v1183
    %v1185 = vsel %vm345, %v1184, %v1180
    %v1186 = vlaneseq
    %v1187 = vshrl.u32 %v1186, 7
    %v1188 = vsub.s32 %v347, %v1187
    %v1189 = vrot.slane %v1073, %v1188
    %v1190 = vsel %vm352, %v1189, %v1185
    %v1191 = vlaneseq
    %v1192 = vshrl.u32 %v1191, 7
    %v1193 = vsub.s32 %v354, %v1192
    %v1194 = vrot.slane %v1076, %v1193
    %v1195 = vsel %vm359, %v1194, %v1190
    %v1196 = vlaneseq
    %v1197 = vshrl.u32 %v1196, 7
    %v1198 = vsub.s32 %v361, %v1197
    %v1199 = vrot.slane %v1079, %v1198
    %v1200 = vsel %vm366, %v1199, %v1195
    %v1201 = vlaneseq
    %v1202 = vshrl.u32 %v1201, 7
    %v1203 = vsub.s32 %v368, %v1202
    %v1204 = vrot.slane %v1082, %v1203
    %v1205 = vsel %vm373, %v1204, %v1200
    %v1206 = vlaneseq
    %v1207 = vshrl.u32 %v1206, 7
    %v1208 = vsub.s32 %v375, %v1207
    %v1209 = vrot.slane %v1085, %v1208
    %v1210 = vsel %vm380, %v1209, %v1205
    %v1211 = vlaneseq
    %v1212 = vshrl.u32 %v1211, 7
    %v1213 = vsub.s32 %v382, %v1212
    %v1214 = vrot.slane %v1088, %v1213
    %v1215 = vsel %vm387, %v1214, %v1210
    %v1216 = vlaneseq
    %v1217 = vshrl.u32 %v1216, 7
    %v1218 = vsub.s32 %v279, %v1217
    %v1219 = vrot.slane %v1091, %v1218
    %v1220 = vlaneseq
    %v1221 = vshrl.u32 %v1220, 7
    %v1222 = vsub.s32 %v284, %v1221
    %v1223 = vrot.slane %v1094, %v1222
    %v1224 = vsel %vm289, %v1223, %v1219
    %v1225 = vlaneseq
    %v1226 = vshrl.u32 %v1225, 7
    %v1227 = vsub.s32 %v291, %v1226
    %v1228 = vrot.slane %v1097, %v1227
    %v1229 = vsel %vm296, %v1228, %v1224
    %v1230 = vlaneseq
    %v1231 = vshrl.u32 %v1230, 7
    %v1232 = vsub.s32 %v298, %v1231
    %v1233 = vrot.slane %v1100, %v1232
    %v1234 = vsel %vm303, %v1233, %v1229
    %v1235 = vlaneseq
    %v1236 = vshrl.u32 %v1235, 7
    %v1237 = vsub.s32 %v305, %v1236
    %v1238 = vrot.slane %v1103, %v1237
    %v1239 = vsel %vm310, %v1238, %v1234
    %v1240 = vlaneseq
    %v1241 = vshrl.u32 %v1240, 7
    %v1242 = vsub.s32 %v312, %v1241
    %v1243 = vrot.slane %v1106, %v1242
    %v1244 = vsel %vm317, %v1243, %v1239
    %v1245 = vlaneseq
    %v1246 = vshrl.u32 %v1245, 7
    %v1247 = vsub.s32 %v319, %v1246
    %v1248 = vrot.slane %v1109, %v1247
    %v1249 = vsel %vm324, %v1248, %v1244
    %v1250 = vlaneseq
    %v1251 = vshrl.u32 %v1250, 7
    %v1252 = vsub.s32 %v326, %v1251
    %v1253 = vrot.slane %v1112, %v1252
    %v1254 = vsel %vm331, %v1253, %v1249
    %v1255 = vlaneseq
    %v1256 = vshrl.u32 %v1255, 7
    %v1257 = vsub.s32 %v333, %v1256
    %v1258 = vrot.slane %v1115, %v1257
    %v1259 = vsel %vm338, %v1258, %v1254
    %v1260 = vlaneseq
    %v1261 = vshrl.u32 %v1260, 7
    %v1262 = vsub.s32 %v340, %v1261
    %v1263 = vrot.slane %v1118, %v1262
    %v1264 = vsel %vm345, %v1263, %v1259
    %v1265 = vlaneseq
    %v1266 = vshrl.u32 %v1265, 7
    %v1267 = vsub.s32 %v347, %v1266
    %v1268 = vrot.slane %v1121, %v1267
    %v1269 = vsel %vm352, %v1268, %v1264
    %v1270 = vlaneseq
    %v1271 = vshrl.u32 %v1270, 7
    %v1272 = vsub.s32 %v354, %v1271
    %v1273 = vrot.slane %v1124, %v1272
    %v1274 = vsel %vm359, %v1273, %v1269
    %v1275 = vlaneseq
    %v1276 = vshrl.u32 %v1275, 7
    %v1277 = vsub.s32 %v361, %v1276
    %v1278 = vrot.slane %v1127, %v1277
    %v1279 = vsel %vm366, %v1278, %v1274
    %v1280 = vlaneseq
    %v1281 = vshrl.u32 %v1280, 7
    %v1282 = vsub.s32 %v368, %v1281
    %v1283 = vrot.slane %v1130, %v1282
    %v1284 = vsel %vm373, %v1283, %v1279
    %v1285 = vlaneseq
    %v1286 = vshrl.u32 %v1285, 7
    %v1287 = vsub.s32 %v375, %v1286
    %v1288 = vrot.slane %v1133, %v1287
    %v1289 = vsel %vm380, %v1288, %v1284
    %v1290 = vlaneseq
    %v1291 = vshrl.u32 %v1290, 7
    %v1292 = vsub.s32 %v382, %v1291
    %v1293 = vrot.slane %v1136, %v1292
    %v1294 = vsel %vm387, %v1293, %v1289
    %v1295 = vsel %vm468, %v1294, %v1215
    %v1297 = vadd.f32 %v884, %v1295
    %1298 = vst [vmem:[#allocation2] sm:$0x3] %v1297
    // Predicated region
    $region10: #{netadapter_forward.1} parent=1 // pred_check
      _
    $region11: #{netadapter_forward.1} parent=1 // pred_check_branch
      %1300 = sbr.rel (0) target = $region13
    $region12: #{netadapter_forward.1} parent=1 // pred_region
      %s1302 = ssub.s32 32, 32
      %1303 = vsyncadd [#allocation3], %s1302
      %s1305 = sshll.u32 [#allocation2], 4
      %s1306 = int_to_ptr.vmem [resolvable:$true] %s1305
      %1308 = dma.vmem_to_hbm [thread:$0]  %s1306, 32, %s2, [#allocation3]
    $region13: #{netadapter_forward.1} parent=1 // pred_fallthru
      _
    // Predicated region
    $region14: #{netadapter_forward.1} parent=1 // pred_check
      _
    $region15: #{netadapter_forward.1} parent=1 // pred_check_branch
      %1310 = sbr.rel (0) target = $region17
    $region16: #{netadapter_forward.1} parent=1 // pred_region
      %1311 = dma.done [#allocation3], 32
    $region17: #{netadapter_forward.1} parent=1 // pred_fallthru
      _
    %1312 = vsyncpa [#allocation3], 1

</llo_original>
